<compile_context>
chip_gen: v7x
topology: tpu7x:2x2x1
jax: 0.10.0
libtpu: 0.0.40
codegen_flags: <defaults>
</compile_context>

<pallas_src>
import functools

import jax
import jax.numpy as jnp
from jax.experimental import pallas as pl
from jax.experimental.pallas import tpu as pltpu


def _round_up(v, m):
    return ((v + m - 1) // m) * m


def _ukd_kernel(x_ref, t_ref, *rest, c_t, alpha, hw, has_mask, tail_mask,
                pixel_axis):
    """One (pixel tile, batch image) grid step.

    x_ref : (C_in, TP)  student logits (block of one image)
    t_ref : (C_t,  TP)  teacher logits
    m_ref : (1,    TP)  optional pixel mask (any dtype)
    out_ref: (8, 128)   partial-sum slab (scalar partial at [0, 0])
    """
    if has_mask:
        m_ref, out_ref = rest
    else:
        (out_ref,) = rest

    x = x_ref[...].astype(jnp.float32)            # (c_in, tp)
    t = t_ref[...].astype(jnp.float32)            # (c_t,  tp)
    if alpha != 1.0:                              # trace-time skip when alpha == 1
        t = t * alpha

    c_in, tp = x.shape

    # ---- logsumexp over all student channels (single max / exp pass) ----
    mx = jnp.max(x, axis=0, keepdims=True)                    # (1, tp)
    e = jnp.exp(x - mx)                                       # (c_in, tp)
    den_sum = jnp.sum(e, axis=0, keepdims=True)               # (1, tp)
    log_den_sum = jnp.log(den_sum)
    den = mx + log_den_sum                                    # logsumexp(x)

    # ---- background logsumexp over channels {0} U {c_t .. c_in-1}:
    # reuse the SAME exponentials; a tiny (c_in, 1) channel mask avoids
    # mid-tile sublane slices and has no cancellation.
    ch_in = jax.lax.broadcasted_iota(jnp.int32, (c_in, 1), 0)
    bkg_mask = jnp.logical_or(ch_in == 0, ch_in >= c_t).astype(jnp.float32)
    bkg_sum = jnp.sum(e * bkg_mask, axis=0, keepdims=True)    # (1, tp)
    out_bkg = jnp.log(bkg_sum) - log_den_sum                  # (1, tp)

    # old (non-background) classes: channels 1 .. c_t-1 (offset-0 slice only)
    lsm = x[0:c_t] - den                                       # (c_t, tp)

    # ---- teacher soft labels: keep unnormalized, divide once per pixel ----
    tm = jnp.max(t, axis=0, keepdims=True)
    et = jnp.exp(t - tm)                                       # (c_t, tp)
    sum_et = jnp.sum(et, axis=0, keepdims=True)                # (1, tp)

    ch_t = jax.lax.broadcasted_iota(jnp.int32, (c_t, 1), 0)
    old_mask = (ch_t >= 1).astype(jnp.float32)                 # (c_t, 1)

    num = et[0:1] * out_bkg + jnp.sum(et * old_mask * lsm, axis=0, keepdims=True)
    # 1/c_t folded into the single per-pixel reciprocal.
    loss = num * pl.reciprocal(sum_et * float(c_t), approx=False)

    if has_mask:
        loss = loss * m_ref[...].astype(jnp.float32)           # (1, tp)
    if tail_mask:
        # Lanes past the end of the (un-padded) pixel axis hold garbage from
        # the partially out-of-bounds edge DMA.  All preceding math is
        # lane-local, so one final (1, tp) select is enough to drop them
        # (also kills any NaN/Inf born in garbage lanes).
        lane = jax.lax.broadcasted_iota(jnp.int32, (1, tp), 1)
        valid = lane < (hw - pl.program_id(pixel_axis) * tp)
        loss = jnp.where(valid, loss, 0.0)

    # One scalar partial per grid step, placed at [0,0] of a disjoint (8,128)
    # slab -> both grid axes can be "parallel" (no serial accumulator / race).
    partial = jnp.sum(loss)
    ri = jax.lax.broadcasted_iota(jnp.int32, (8, 128), 0)
    ci = jax.lax.broadcasted_iota(jnp.int32, (8, 128), 1)
    out_ref[...] = jnp.where((ri == 0) & (ci == 0), partial, 0.0)


def unbiased_kd_loss(inputs, targets, mask=None, *, alpha=1.0,
                     reduction="mean", tile_p=None):
    """Pallas implementation of UnbiasedKnowledgeDistillationLoss.forward.

    inputs : (N, C_in, H, W) student logits (NCHW, like the PyTorch module)
    targets: (N, C_t,  H, W) teacher logits, C_t < C_in
    mask   : optional (N, H, W) pixel mask (float / int8 / bool all fine)
    """
    # TODO(synk): reduction='none' (per-pixel NCHW output) not implemented;
    # only 'mean' and 'sum' are lowered in-kernel.
    assert reduction in ("mean", "sum")
    n, c_in, h, w = inputs.shape
    c_t = targets.shape[1]
    assert targets.shape == (n, c_t, h, w)
    assert c_in > c_t >= 2
    hw = h * w
    has_mask = mask is not None

    # Free (contiguous) reshapes only -- no transpose / astype / pad HBM passes.
    x = inputs.reshape(n, c_in, hw)
    t = targets.reshape(n, c_t, hw)
    args = [x, t]
    if has_mask:
        args.append(mask.reshape(n, 1, hw))   # keep caller dtype (bool/int8 saves HBM)

    # ---- per-generation VMEM sizing (64 MiB v7x vs 128 MiB v5e/v6e) ----
    vmem_phys = 0
    try:
        info = pltpu.get_tpu_info()
        vmem_phys = int(getattr(info, "vmem_capacity_bytes", 0) or 0)
    except Exception:
        vmem_phys = 0
    if vmem_phys >= 96 * 1024 * 1024:
        vmem_limit = 96 * 1024 * 1024         # 128-MiB parts (v5e / v6e)
    else:
        vmem_limit = 44 * 1024 * 1024         # 64-MiB parts (v7x) / unknown

    in_b = jnp.dtype(inputs.dtype).itemsize
    t_b = jnp.dtype(targets.dtype).itemsize
    m_b = jnp.dtype(mask.dtype).itemsize if has_mask else 0
    # Real footprint per lane: double-buffered input blocks + f32 temporaries
    # (x, e, t, et full-width plus ~8 single-row (1, tp) temps).
    per_lane = 2 * (c_in * in_b + c_t * t_b + m_b) + 4 * (2 * c_in + 2 * c_t + 8)
    cap = max(128, (int(vmem_limit * 0.7) // per_lane) // 128 * 128)

    if tile_p is None:
        tile_p = 65536                        # push tiles large; capped below
    tp = min(int(tile_p), cap, _round_up(hw, 128))
    tp = max(128, (tp // 128) * 128)

    # Prefer a tile that divides hw exactly (traces out the tail-mask path),
    # unless that would more than ~double the grid-step count.
    if hw % 128 == 0 and hw % tp != 0:
        d = tp
        while d >= 128 and hw % d != 0:
            d -= 128
        if d >= 128 and 2 * d >= tp:
            tp = d
    tail_mask = (hw % tp) != 0
    num_tiles = -(-hw // tp)

    # Put the larger extent first so megacore sharding always has >1 unit of
    # parallel work (both axes write disjoint output blocks -> both parallel).
    pixel_major = num_tiles >= n
    if pixel_major:
        grid = (num_tiles, n)
        pixel_axis = 0
        idx_in = lambda i, b: (b, 0, i)
        idx_out = lambda i, b: (b, i, 0, 0)
    else:
        grid = (n, num_tiles)
        pixel_axis = 1
        idx_in = lambda b, i: (b, 0, i)
        idx_out = lambda b, i: (b, i, 0, 0)

    in_specs = [
        pl.BlockSpec((None, c_in, tp), idx_in),
        pl.BlockSpec((None, c_t, tp), idx_in),
    ]
    if has_mask:
        in_specs.append(pl.BlockSpec((None, 1, tp), idx_in))

    kernel = functools.partial(
        _ukd_kernel, c_t=c_t, alpha=float(alpha), hw=hw,
        has_mask=has_mask, tail_mask=tail_mask, pixel_axis=pixel_axis)

    partials = pl.pallas_call(
        kernel,
        out_shape=jax.ShapeDtypeStruct((n, num_tiles, 8, 128), jnp.float32),
        grid_spec=pltpu.PrefetchScalarGridSpec(
            num_scalar_prefetch=0,
            grid=grid,
            in_specs=in_specs,
            out_specs=pl.BlockSpec((None, None, 8, 128), idx_out),
        ),
        compiler_params=pltpu.CompilerParams(
            dimension_semantics=("parallel", "parallel"),
            vmem_limit_bytes=vmem_limit),
    )(*args)

    total = jnp.sum(partials[:, :, 0, 0])
    denom = float(n * hw) if reduction == "mean" else 1.0
    return -total / denom


def _ref_loss(inputs, targets, mask=None, alpha=1.0, reduction="mean"):
    """Pure-JAX reference mirroring the PyTorch forward exactly."""
    new_cl = inputs.shape[1] - targets.shape[1]
    t = targets * alpha
    idx = jnp.array([0] + list(range(targets.shape[1], inputs.shape[1])))
    den = jax.scipy.special.logsumexp(inputs, axis=1)
    outputs_no_bgk = inputs[:, 1:-new_cl] - den[:, None]
    outputs_bkg = jax.scipy.special.logsumexp(inputs[:, idx, :, :], axis=1) - den
    labels = jax.nn.softmax(t, axis=1)
    loss = (labels[:, 0] * outputs_bkg
            + (labels[:, 1:] * outputs_no_bgk).sum(axis=1)) / targets.shape[1]
    if mask is not None:
        loss = loss * mask.astype(jnp.float32)
    if reduction == "mean":
        return -jnp.mean(loss)
    return -jnp.sum(loss)


if __name__ == "__main__":
    key = jax.random.PRNGKey(0)
    k1, k2, k3, k4, k5, k6, k7, k8 = jax.random.split(key, 8)

    # Test 1: no mask, alpha=1, hw divisible by the chosen tile (tail traced out).
    n, c_in, c_t, h, w = 2, 6, 4, 16, 16
    inputs = jax.random.normal(k1, (n, c_in, h, w), jnp.float32)
    targets = jax.random.normal(k2, (n, c_t, h, w), jnp.float32)
    out = jax.block_until_ready(unbiased_kd_loss(inputs, targets, alpha=1.0))
    ref = _ref_loss(inputs, targets, alpha=1.0)
    assert jnp.allclose(out, ref, atol=1e-5, rtol=1e-4), (out, ref)

    # Test 2: f32 mask + alpha != 1 + ragged pixel tail (hw=640, tile_p=512).
    n2, h2, w2 = 2, 16, 40
    inputs2 = jax.random.normal(k3, (n2, c_in, h2, w2), jnp.float32)
    targets2 = jax.random.normal(k4, (n2, c_t, h2, w2), jnp.float32)
    mask2 = (jax.random.uniform(k5, (n2, h2, w2)) > 0.3).astype(jnp.float32)
    out2 = jax.block_until_ready(
        unbiased_kd_loss(inputs2, targets2, mask2, alpha=2.0, tile_p=512))
    ref2 = _ref_loss(inputs2, targets2, mask2, alpha=2.0)
    assert jnp.allclose(out2, ref2, atol=1e-5, rtol=1e-4), (out2, ref2)

    # Test 3: bf16 logits + int8 mask (narrow HBM dtypes), reduction='sum'.
    n3, c_in3, c_t3, h3, w3 = 1, 8, 5, 16, 16
    inputs3 = jax.random.normal(k6, (n3, c_in3, h3, w3), jnp.float32).astype(jnp.bfloat16)
    targets3 = jax.random.normal(k7, (n3, c_t3, h3, w3), jnp.float32).astype(jnp.bfloat16)
    mask3 = (jax.random.uniform(k8, (n3, h3, w3)) > 0.5).astype(jnp.int8)
    out3 = jax.block_until_ready(
        unbiased_kd_loss(inputs3, targets3, mask3, alpha=0.5, reduction="sum"))
    ref3 = _ref_loss(inputs3.astype(jnp.float32), targets3.astype(jnp.float32),
                     mask3.astype(jnp.float32), alpha=0.5, reduction="sum")
    assert jnp.allclose(out3, ref3, atol=1e-4, rtol=1e-3), (out3, ref3)

    print("KERNEL_OK")
</pallas_src>

<mosaic_0001>
module attributes {stable_mosaic.version = 11 : i64} {
  func.func @_ukd_kernel(%arg0: i32, %arg1: i32, %arg2: memref<1x6x256xf32, #tpu.memory_space<vmem>>, %arg3: memref<1x4x256xf32, #tpu.memory_space<vmem>>, %arg4: memref<1x1x8x128xf32, #tpu.memory_space<vmem>>) attributes {dimension_semantics = [#tpu.dimension_semantics<parallel>, #tpu.dimension_semantics<parallel>], iteration_bounds = array<i64: 2, 1>, scalar_prefetch = 0 : i64, scratch_operands = 0 : i64, tpu.core_type = #tpu.core_type<tc>, window_params = [{transform_indices = @transform_0, window_bounds = array<i64: 1, 6, 256>}, {transform_indices = @transform_1, window_bounds = array<i64: 1, 4, 256>}, {transform_indices = @transform_2, window_bounds = array<i64: 1, 1, 8, 128>}]} {
    %c0 = arith.constant 0 : index
    %c0_0 = arith.constant 0 : index
    %c0_1 = arith.constant 0 : index
    %0 = vector.load %arg2[%c0, %c0_0, %c0_1] : memref<1x6x256xf32, #tpu.memory_space<vmem>>, vector<1x6x256xf32>
    %1 = vector.shape_cast %0 : vector<1x6x256xf32> to vector<6x256xf32>
    %c0_2 = arith.constant 0 : index
    %c0_3 = arith.constant 0 : index
    %c0_4 = arith.constant 0 : index
    %2 = vector.load %arg3[%c0_2, %c0_3, %c0_4] : memref<1x4x256xf32, #tpu.memory_space<vmem>>, vector<1x4x256xf32>
    %3 = vector.shape_cast %2 : vector<1x4x256xf32> to vector<4x256xf32>
    %cst = arith.constant dense<0xFF800000> : vector<256xf32>
    %4 = vector.multi_reduction <maximumf>, %1, %cst [0] : vector<6x256xf32> to vector<256xf32>
    %5 = vector.shape_cast %4 : vector<256xf32> to vector<1x256xf32>
    %6 = vector.broadcast %5 : vector<1x256xf32> to vector<6x256xf32>
    %7 = arith.subf %1, %6 : vector<6x256xf32>
    %8 = math.exp %7 : vector<6x256xf32>
    %cst_5 = arith.constant dense<0.000000e+00> : vector<256xf32>
    %9 = vector.multi_reduction <add>, %8, %cst_5 [0] : vector<6x256xf32> to vector<256xf32>
    %10 = vector.shape_cast %9 : vector<256xf32> to vector<1x256xf32>
    %11 = math.log %10 : vector<1x256xf32>
    %12 = arith.addf %5, %11 : vector<1x256xf32>
    %13 = tpu.iota {dimensions = array<i32: 0>} : vector<6x1xi32>
    %c0_i32 = arith.constant 0 : i32
    %14 = vector.broadcast %c0_i32 : i32 to vector<6x1xi32>
    %15 = arith.cmpi eq, %13, %14 : vector<6x1xi32>
    %c4_i32 = arith.constant 4 : i32
    %16 = vector.broadcast %c4_i32 : i32 to vector<6x1xi32>
    %17 = arith.cmpi sge, %13, %16 : vector<6x1xi32>
    %18 = arith.ori %15, %17 : vector<6x1xi1>
    %19 = arith.extui %18 : vector<6x1xi1> to vector<6x1xi32>
    %20 = arith.sitofp %19 : vector<6x1xi32> to vector<6x1xf32>
    %21 = vector.broadcast %20 : vector<6x1xf32> to vector<6x256xf32>
    %22 = arith.mulf %8, %21 : vector<6x256xf32>
    %cst_6 = arith.constant dense<0.000000e+00> : vector<256xf32>
    %23 = vector.multi_reduction <add>, %22, %cst_6 [0] : vector<6x256xf32> to vector<256xf32>
    %24 = vector.shape_cast %23 : vector<256xf32> to vector<1x256xf32>
    %25 = math.log %24 : vector<1x256xf32>
    %26 = arith.subf %25, %11 : vector<1x256xf32>
    %27 = vector.extract_strided_slice %1 {offsets = [0, 0], sizes = [4, 256], strides = [1, 1]} : vector<6x256xf32> to vector<4x256xf32>
    %28 = vector.broadcast %12 : vector<1x256xf32> to vector<4x256xf32>
    %29 = arith.subf %27, %28 : vector<4x256xf32>
    %cst_7 = arith.constant dense<0xFF800000> : vector<256xf32>
    %30 = vector.multi_reduction <maximumf>, %3, %cst_7 [0] : vector<4x256xf32> to vector<256xf32>
    %31 = vector.shape_cast %30 : vector<256xf32> to vector<1x256xf32>
    %32 = vector.broadcast %31 : vector<1x256xf32> to vector<4x256xf32>
    %33 = arith.subf %3, %32 : vector<4x256xf32>
    %34 = math.exp %33 : vector<4x256xf32>
    %cst_8 = arith.constant dense<0.000000e+00> : vector<256xf32>
    %35 = vector.multi_reduction <add>, %34, %cst_8 [0] : vector<4x256xf32> to vector<256xf32>
    %36 = vector.shape_cast %35 : vector<256xf32> to vector<1x256xf32>
    %37 = tpu.iota {dimensions = array<i32: 0>} : vector<4x1xi32>
    %c1_i32 = arith.constant 1 : i32
    %38 = vector.broadcast %c1_i32 : i32 to vector<4x1xi32>
    %39 = arith.cmpi sge, %37, %38 : vector<4x1xi32>
    %40 = arith.extui %39 : vector<4x1xi1> to vector<4x1xi32>
    %41 = arith.sitofp %40 : vector<4x1xi32> to vector<4x1xf32>
    %42 = vector.extract_strided_slice %34 {offsets = [0, 0], sizes = [1, 256], strides = [1, 1]} : vector<4x256xf32> to vector<1x256xf32>
    %43 = arith.mulf %42, %26 : vector<1x256xf32>
    %44 = vector.broadcast %41 : vector<4x1xf32> to vector<4x256xf32>
    %45 = arith.mulf %34, %44 : vector<4x256xf32>
    %46 = arith.mulf %45, %29 : vector<4x256xf32>
    %cst_9 = arith.constant dense<0.000000e+00> : vector<256xf32>
    %47 = vector.multi_reduction <add>, %46, %cst_9 [0] : vector<4x256xf32> to vector<256xf32>
    %48 = vector.shape_cast %47 : vector<256xf32> to vector<1x256xf32>
    %49 = arith.addf %43, %48 : vector<1x256xf32>
    %cst_10 = arith.constant 4.000000e+00 : f32
    %50 = vector.broadcast %cst_10 : f32 to vector<1x256xf32>
    %51 = arith.mulf %36, %50 : vector<1x256xf32>
    %52 = tpu.reciprocal %51 : vector<1x256xf32> -> vector<1x256xf32>
    %53 = arith.mulf %49, %52 : vector<1x256xf32>
    %54 = vector.shape_cast %53 : vector<1x256xf32> to vector<1x1x256xf32>
    %cst_11 = arith.constant dense<0.000000e+00> : vector<1xf32>
    %55 = vector.multi_reduction <add>, %54, %cst_11 [1, 2] : vector<1x1x256xf32> to vector<1xf32>
    %56 = vector.shape_cast %55 : vector<1xf32> to vector<1x1x1xf32>
    %57 = vector.extract %56[0, 0, 0] : f32 from vector<1x1x1xf32>
    %58 = tpu.iota {dimensions = array<i32: 0>} : vector<8x128xi32>
    %59 = tpu.iota {dimensions = array<i32: 1>} : vector<8x128xi32>
    %c0_i32_12 = arith.constant 0 : i32
    %60 = vector.broadcast %c0_i32_12 : i32 to vector<8x128xi32>
    %61 = arith.cmpi eq, %58, %60 : vector<8x128xi32>
    %c0_i32_13 = arith.constant 0 : i32
    %62 = vector.broadcast %c0_i32_13 : i32 to vector<8x128xi32>
    %63 = arith.cmpi eq, %59, %62 : vector<8x128xi32>
    %64 = arith.andi %61, %63 : vector<8x128xi1>
    %cst_14 = arith.constant 0.000000e+00 : f32
    %65 = vector.broadcast %57 : f32 to vector<8x128xf32>
    %66 = vector.broadcast %cst_14 : f32 to vector<8x128xf32>
    %67 = arith.select %64, %65, %66 : vector<8x128xi1>, vector<8x128xf32>
    %c0_15 = arith.constant 0 : index
    %c0_16 = arith.constant 0 : index
    %c0_17 = arith.constant 0 : index
    %c0_18 = arith.constant 0 : index
    %68 = vector.load %arg4[%c0_15, %c0_16, %c0_17, %c0_18] : memref<1x1x8x128xf32, #tpu.memory_space<vmem>>, vector<1x1x8x128xf32>
    %69 = vector.shape_cast %68 : vector<1x1x8x128xf32> to vector<8x128xf32>
    %70 = vector.shape_cast %67 : vector<8x128xf32> to vector<1x1x8x128xf32>
    tpu.vector_store %arg4[%c0_15, %c0_16, %c0_17, %c0_18], %70 {strides = array<i32>} : memref<1x1x8x128xf32, #tpu.memory_space<vmem>>, vector<1x1x8x128xf32>,
    return
  }
  func.func @transform_0(%arg0: i32, %arg1: i32) -> (i32, i32, i32) {
    %c0_i32 = arith.constant 0 : i32
    %c0_i32_0 = arith.constant 0 : i32
    return %arg0, %c0_i32, %arg1 : i32, i32, i32
  }
  func.func @transform_1(%arg0: i32, %arg1: i32) -> (i32, i32, i32) {
    %c0_i32 = arith.constant 0 : i32
    %c0_i32_0 = arith.constant 0 : i32
    return %arg0, %c0_i32, %arg1 : i32, i32, i32
  }
  func.func @transform_2(%arg0: i32, %arg1: i32) -> (i32, i32, i32, i32) {
    %c0_i32 = arith.constant 0 : i32
    %c0_i32_0 = arith.constant 0 : i32
    %c0_i32_1 = arith.constant 0 : i32
    return %arg0, %arg1, %c0_i32, %c0_i32_0 : i32, i32, i32, i32
  }
}

</mosaic_0001>

<llo_original>
// kernel: tpu_custom_call.1
$region0: #{tpu_custom_call.1}
  #allocation0 [shape = 'u32[]', space=smem, size = 0x4, offset = 0x4, fixed_abs, tag = 'smem constant byte address 0x4 - core index']
  #allocation1 [shape = 'u32[144,128]{1,0:T(1,128)}', space=vmem, size = 0x12000, scoped, tag = 'internal scratch']
  %s0 = inlined_call_operand.vmem [shape: f32[2,6,256], index: 0, kind: input, shape index: {}]
  %s1 = inlined_call_operand.vmem [shape: f32[2,4,256], index: 1, kind: input, shape index: {}]
  %s2 = inlined_call_operand.hbm [shape: f32[2,1,8,128], index: 2, kind: output, shape index: {}]
  %s3 = sld [smem:[#allocation0]]
  $region41: #{tpu_custom_call.1} parent=0
    _
  %s5 = ssub.s32 1, %s3
  %s6 = scalar_select 0, %s5, %s3
  $region1: #{tpu_custom_call.1} parent=0
    #allocation2 [shape = 'u8[8192]{0}', space=vmem, size = 0x2000, scoped, tag = 'output window, operand 0']
    #allocation3 [shape = 's32[2]{0}', space=sflag, size = 0x8, scoped, tag = 'scoped memory for tpu_custom_call.1']
    %7 = vsyncpa [#allocation3], 0
    %s8 = scalar_lea.sflag [#allocation3], 1
    %9 = vsyncpa %s8, 0
    loop: start=0, step=1, limit=4
    $region2: #{tpu_custom_call.1} parent=1 // loop_pre_header
      _
    $region3: #{tpu_custom_call.1} parent=1 // loop_header
      %s11 = sphi 0, %s15
      %p12 = scmp.ge.s32.totalorder %s11, 4
      %s18 = sphi 0, %s30
      %s19 = sphi 0, %s26
      %s20 = sphi 0, %s18
      %s21 = sphi 0, %s19
      %s22 = sphi 0, %s20
      %s23 = sphi 0, %s21
      %s35 = sphi 0, %s37
      %s38 = sphi 0, %s35
      %s39 = sphi 0, %s38
      %s55 = sphi 0, %s39
      %s63 = sphi 0, %s65
      %s66 = sphi 0, %s63
      %s67 = sphi 0, %s66
      %s83 = sphi 0, %s67
      %s91 = sphi 0, %s93
      %s94 = sphi 0, %s91
      %s95 = sphi 0, %s94
      %s111 = sphi 0, %s95
    $region4: #{tpu_custom_call.1} parent=1 // loop_header_branch
      %14 = sbr.rel (%p12) target = $region8
    $region5: #{tpu_custom_call.1} parent=1 // loop_body
      %s16 = ssub.s32 %s11, 1
      %s17 = ssub.s32 %s11, 2
      %s24 = sadd.s32 1, %s19
      %p25 = scmp.ge.s32.totalorder %s24, 1
      %s26 = scalar_select %p25, 0, %s24
      %s27 = sadd.s32 1, %s18
      %s28 = scalar_select %p25, %s27, %s18
      %p29 = scmp.ge.s32.totalorder %s28, 2
      %s30 = scalar_select %p29, 0, %s28
      %s31 = ssub.s32 %s18, %s30
      %s32 = ssub.s32 %s19, %s26
      %s33 = sor.u32 %s31, %s32
      %p34 = scmp.eq.s32.totalorder %s33, 0
      %s36 = sadd.s32 %s35, 1
      %s37 = scalar_select %p34, %s35, %s36
      %p40 = pneg %p34
      %p41 = scmp.eq.s32.totalorder %s11, 1
      %p42 = por %p40, %p41
      %p43 = scmp.ne.s32.totalorder %s35, %s38
      %p44 = scmp.eq.s32.totalorder %s11, 0
      %p45 = por %p43, %p44
      %p46 = scmp.ne.s32.totalorder %s35, %s38
      %p47 = scmp.eq.s32.totalorder %s16, 1
      %p48 = por %p46, %p47
      %p49 = scmp.ne.s32.totalorder %s38, %s39
      %p50 = scmp.eq.s32.totalorder %s16, 0
      %p51 = por %p49, %p50
      %p52 = scmp.ne.s32.totalorder %s38, %s39
      %p53 = scmp.eq.s32.totalorder %s17, 1
      %p54 = por %p52, %p53
      %p56 = scmp.ne.s32.totalorder %s39, %s55
      %p57 = scmp.eq.s32.totalorder %s17, 0
      %p58 = por %p56, %p57
      %s59 = ssub.s32 %s18, %s30
      %s60 = ssub.s32 %s19, %s26
      %s61 = sor.u32 %s59, %s60
      %p62 = scmp.eq.s32.totalorder %s61, 0
      %s64 = sadd.s32 %s63, 1
      %s65 = scalar_select %p62, %s63, %s64
      %p68 = pneg %p62
      %p69 = scmp.eq.s32.totalorder %s11, 1
      %p70 = por %p68, %p69
      %p71 = scmp.ne.s32.totalorder %s63, %s66
      %p72 = scmp.eq.s32.totalorder %s11, 0
      %p73 = por %p71, %p72
      %p74 = scmp.ne.s32.totalorder %s63, %s66
      %p75 = scmp.eq.s32.totalorder %s16, 1
      %p76 = por %p74, %p75
      %p77 = scmp.ne.s32.totalorder %s66, %s67
      %p78 = scmp.eq.s32.totalorder %s16, 0
      %p79 = por %p77, %p78
      %p80 = scmp.ne.s32.totalorder %s66, %s67
      %p81 = scmp.eq.s32.totalorder %s17, 1
      %p82 = por %p80, %p81
      %p84 = scmp.ne.s32.totalorder %s67, %s83
      %p85 = scmp.eq.s32.totalorder %s17, 0
      %p86 = por %p84, %p85
      %s87 = ssub.s32 %s18, %s30
      %s88 = ssub.s32 %s19, %s26
      %s89 = sor.u32 %s87, %s88
      %p90 = scmp.eq.s32.totalorder %s89, 0
      %s92 = sadd.s32 %s91, 1
      %s93 = scalar_select %p90, %s91, %s92
      %p96 = pneg %p90
      %p97 = scmp.eq.s32.totalorder %s11, 1
      %p98 = por %p96, %p97
      %p99 = scmp.ne.s32.totalorder %s91, %s94
      %p100 = scmp.eq.s32.totalorder %s11, 0
      %p101 = por %p99, %p100
      %p102 = scmp.ne.s32.totalorder %s91, %s94
      %p103 = scmp.eq.s32.totalorder %s16, 1
      %p104 = por %p102, %p103
      %p105 = scmp.ne.s32.totalorder %s94, %s95
      %p106 = scmp.eq.s32.totalorder %s16, 0
      %p107 = por %p105, %p106
      %p108 = scmp.ne.s32.totalorder %s94, %s95
      %p109 = scmp.eq.s32.totalorder %s17, 1
      %p110 = por %p108, %p109
      %p112 = scmp.ne.s32.totalorder %s95, %s111
      %p113 = scmp.eq.s32.totalorder %s17, 0
      %p114 = por %p112, %p113
      %p115 = scmp.le.s32.totalorder 1, %s11
      %p116 = scmp.lt.s32.totalorder %s11, 3
      %p117 = pnand %p115, %p116
      %p118 = pneg %p117
      // Predicated region
      $region9: #{tpu_custom_call.1} parent=5 // pred_check
        _
      $region10: #{tpu_custom_call.1} parent=5 // pred_check_branch
        %120 = sbr.rel (%p117) target = $region12
      $region11: #{tpu_custom_call.1} parent=5 // pred_region
        %s121 = ssub.s32 %s11, 1
      $region12: #{tpu_custom_call.1} parent=5 // pred_fallthru
        _
      %p122 = scmp.lt.s32.totalorder %s11, 2
      // Predicated region
      $region13: #{tpu_custom_call.1} parent=5 // pred_check
        %p123 = pneg %p122
      $region14: #{tpu_custom_call.1} parent=5 // pred_check_branch
        %125 = sbr.rel (%p123) target = $region16
      $region15: #{tpu_custom_call.1} parent=5 // pred_region
        // Predicated region
        $region17: #{tpu_custom_call.1} parent=15 // pred_check
          %p126 = pneg %p45
        $region18: #{tpu_custom_call.1} parent=15 // pred_check_branch
          %128 = sbr.rel (%p126) target = $region20
        $region19: #{tpu_custom_call.1} parent=15 // pred_region
          %s129 = smul.u32 2, %s19
          %p130 = scmp.lt.s32.totalorder %s18, 1
          %s131 = scalar_select %p130, %s18, 1
          %p132 = scmp.lt.s32.totalorder %s129, 1
          %s133 = scalar_select %p132, %s129, 1
          %s134 = smul.addr %s131, 2
          %s135 = sadd.s32 %s133, %s134
          %s136 = smul.addr %s135, 8
          %s137 = scalar_lea.vmem %s0, %s136
          %s138 = smul.u32 2, %s19
        $region20: #{tpu_custom_call.1} parent=15 // pred_fallthru
          _
        // Predicated region
        $region21: #{tpu_custom_call.1} parent=15 // pred_check
          %p139 = pneg %p73
        $region22: #{tpu_custom_call.1} parent=15 // pred_check_branch
          %141 = sbr.rel (%p139) target = $region24
        $region23: #{tpu_custom_call.1} parent=15 // pred_region
          %s142 = smul.u32 2, %s19
          %p143 = scmp.lt.s32.totalorder %s18, 1
          %s144 = scalar_select %p143, %s18, 1
          %p145 = scmp.lt.s32.totalorder %s142, 1
          %s146 = scalar_select %p145, %s142, 1
          %s147 = smul.addr %s144, 2
          %s148 = sadd.s32 %s146, %s147
          %s149 = smul.addr %s148, 4
          %s150 = scalar_lea.vmem %s1, %s149
          %s151 = smul.u32 2, %s19
        $region24: #{tpu_custom_call.1} parent=15 // pred_fallthru
          _
      $region16: #{tpu_custom_call.1} parent=5 // pred_fallthru
        _
      %p152 = scmp.le.s32.totalorder 1, %s11
      %p153 = scmp.lt.s32.totalorder %s11, 3
      %p154 = pnand %p152, %p153
      %p155 = pneg %p154
      // Predicated region
      $region25: #{tpu_custom_call.1} parent=5 // pred_check
        _
      $region26: #{tpu_custom_call.1} parent=5 // pred_check_branch
        %157 = sbr.rel (%p154) target = $region28
      $region27: #{tpu_custom_call.1} parent=5 // pred_region
        %s158 = ssub.s32 %s11, 1
        %s159 = smul.u32 2, %s21
        %p160 = scmp.lt.s32.totalorder %s20, 1
        %s161 = scalar_select %p160, %s20, 1
        %p162 = scmp.lt.s32.totalorder %s159, 1
        %s163 = scalar_select %p162, %s159, 1
        %s164 = smul.addr %s161, 2
        %s165 = sadd.s32 %s163, %s164
        %s166 = smul.addr %s165, 8
        %s167 = scalar_lea.vmem %s0, %s166
        %p168 = pneg %p51
        %p169 = pneg %p48
        %s170 = smul.u32 2, %s21
        %p171 = scmp.lt.s32.totalorder %s20, 1
        %s172 = scalar_select %p171, %s20, 1
        %p173 = scmp.lt.s32.totalorder %s170, 1
        %s174 = scalar_select %p173, %s170, 1
        %s175 = smul.addr %s172, 2
        %s176 = sadd.s32 %s174, %s175
        %s177 = smul.addr %s176, 4
        %s178 = scalar_lea.vmem %s1, %s177
        %p179 = pneg %p79
        %p180 = pneg %p76
        %p181 = pneg %p107
        %p182 = pneg %p104
        %s183 = sand.u32 %s94, 1
        %s184 = scalar_lea.sflag [#allocation3], %s183
        %s185 = sand.u32 %s94, 1
        %s186 = smul.addr %s185, 8
        %s187 = scalar_lea.vmem [#allocation2], %s186
        %s188 = smul.u32 2, %s21
        %p189 = scmp.lt.s32.totalorder %s20, 1
        %s190 = scalar_select %p189, %s20, 1
        %p191 = scmp.lt.s32.totalorder %s188, 1
        %s192 = scalar_select %p191, %s188, 1
        %s193 = smul.addr %s190, 2
        %s194 = sadd.s32 %s192, %s193
        %s195 = smul.addr %s194, 8
        %s196 = scalar_lea.vmem %s0, %s195
        %s197 = smul.u32 2, %s21
        %s198 = smul.u32 2, %s21
        %p199 = scmp.lt.s32.totalorder %s20, 1
        %s200 = scalar_select %p199, %s20, 1
        %p201 = scmp.lt.s32.totalorder %s198, 1
        %s202 = scalar_select %p201, %s198, 1
        %s203 = smul.addr %s200, 2
        %s204 = sadd.s32 %s202, %s203
        %s205 = smul.addr %s204, 4
        %s206 = scalar_lea.vmem %s1, %s205
        %s207 = smul.u32 2, %s21
        %v208 = vld [vmem:[%s196] sm:$0x3f]
        %v209 = vld [vmem:[%s196 + $0x8] sm:$0x3f]
        %v210 = vld [vmem:[%s206] sm:$0xff]
        %vm211 = vcmask 1045504
        %v212 = vsel %vm211, %v208, -inf
        %v213 = vrot.slane %v212, 4
        %v214 = vmax.f32 %v212, %v213
        %v215 = vrot.slane %v214, 2
        %v216 = vmax.f32 %v214, %v215
        %v217 = vrot.slane %v216, 1
        %v218 = vmax.f32 %v216, %v217
        %v219 = vsel %vm211, %v209, -inf
        %v220 = vrot.slane %v219, 4
        %v221 = vmax.f32 %v219, %v220
        %v222 = vrot.slane %v221, 2
        %v223 = vmax.f32 %v221, %v222
        %v224 = vrot.slane %v223, 1
        %v225 = vmax.f32 %v223, %v224
        %v226 = vsub.f32 %v208, %v218
        %v227 = vsub.f32 %v209, %v225
        %v228 = vmul.f32 %v226, 1.442695
        %v229 = vpow.pop %v228
        %v230 = vmul.f32 %v227, 1.442695
        %v231 = vpow.pop %v230
        %v232 = vsel %vm211, %v229, 0.0
        %v233 = vrot.slane %v232, 4
        %v234 = vadd.f32 %v232, %v233
        %v235 = vrot.slane %v234, 2
        %v236 = vadd.f32 %v234, %v235
        %v237 = vrot.slane %v236, 1
        %v238 = vadd.f32 %v236, %v237
        %v239 = vsel %vm211, %v231, 0.0
        %v240 = vrot.slane %v239, 4
        %v241 = vadd.f32 %v239, %v240
        %v242 = vrot.slane %v241, 2
        %v243 = vadd.f32 %v241, %v242
        %v244 = vrot.slane %v243, 1
        %v245 = vadd.f32 %v243, %v244
        %v246 = vlog2.pop %v238
        %v247 = vmul.f32 %v246, 0.6931472
        %v248 = vlog2.pop %v245
        %v249 = vmul.f32 %v248, 0.6931472
        %v250 = vadd.f32 %v218, %v247
        %v251 = vadd.f32 %v225, %v249
        %v252 = vlaneseq
        %v253 = vshrl.u32 %v252, 7
        %vm254 = vcmp.eq.s32.totalorder %v253, 0
        %vm255 = vcmp.ge.s32.totalorder %v253, 4
        %vm256 = vmor %vm254, %vm255
        %v257 = vsel %vm256, 1, 0
        %v258 = vcvt.s32.f32 %v257
        %v259 = vmul.f32 %v229, %v258
        %v260 = vmul.f32 %v231, %v258
        %v261 = vsel %vm211, %v259, 0.0
        %v262 = vrot.slane %v261, 4
        %v263 = vadd.f32 %v261, %v262
        %v264 = vrot.slane %v263, 2
        %v265 = vadd.f32 %v263, %v264
        %v266 = vrot.slane %v265, 1
        %v267 = vadd.f32 %v265, %v266
        %v268 = vsel %vm211, %v260, 0.0
        %v269 = vrot.slane %v268, 4
        %v270 = vadd.f32 %v268, %v269
        %v271 = vrot.slane %v270, 2
        %v272 = vadd.f32 %v270, %v271
        %v273 = vrot.slane %v272, 1
        %v274 = vadd.f32 %v272, %v273
        %v275 = vlog2.pop %v267
        %v276 = vmul.f32 %v275, 0.6931472
        %v277 = vlog2.pop %v274
        %v278 = vmul.f32 %v277, 0.6931472
        %v279 = vsub.f32 %v276, %v247
        %v280 = vsub.f32 %v278, %v249
        %v281 = vsub.f32 %v208, %v250
        %v282 = vsub.f32 %v209, %v251
        %v284 = vcombine.high %v210, %v210
        %vm286 = vcmask 1043456
        %v287 = vsel %vm286, %v210, -inf
        %v288 = vrot.slane %v287, 4
        %v289 = vmax.f32 %v287, %v288
        %v290 = vrot.slane %v289, 2
        %v291 = vmax.f32 %v289, %v290
        %v292 = vrot.slane %v291, 1
        %v293 = vmax.f32 %v291, %v292
        %v294 = vsel %vm286, %v284, -inf
        %v295 = vrot.slane %v294, 4
        %v296 = vmax.f32 %v294, %v295
        %v297 = vrot.slane %v296, 2
        %v298 = vmax.f32 %v296, %v297
        %v299 = vrot.slane %v298, 1
        %v300 = vmax.f32 %v298, %v299
        %v303 = vcombine.low %v293, %v300
        %v305 = vsub.f32 %v210, %v303
        %v306 = vmul.f32 %v305, 1.442695
        %v307 = vpow.pop %v306
        %v309 = vcombine.high %v307, %v307
        %v311 = vsel %vm286, %v307, 0.0
        %v312 = vrot.slane %v311, 4
        %v313 = vadd.f32 %v311, %v312
        %v314 = vrot.slane %v313, 2
        %v315 = vadd.f32 %v313, %v314
        %v316 = vrot.slane %v315, 1
        %v317 = vadd.f32 %v315, %v316
        %v318 = vsel %vm286, %v309, 0.0
        %v319 = vrot.slane %v318, 4
        %v320 = vadd.f32 %v318, %v319
        %v321 = vrot.slane %v320, 2
        %v322 = vadd.f32 %v320, %v321
        %v323 = vrot.slane %v322, 1
        %v324 = vadd.f32 %v322, %v323
        %vm325 = vcmp.ge.s32.totalorder %v253, 1
        %v326 = vsel %vm325, 1, 0
        %v327 = vcvt.s32.f32 %v326
        %v330 = vcombine.low %v279, %v280
        %v332 = vmul.f32 %v307, %v330
        %v335 = vunpack.c.l.s4 839922192
        %v336 = vunpack.c.0.s8 %v335
        %v337 = vlaneseq
        %v338 = vshrl.u32 %v337, 7
        %v339 = vsub.s32 %v336, %v338
        %v340 = vrot.slane %v327, %v339
        %v342 = vmul.f32 %v307, %v340
        %v345 = vcombine.low %v281, %v282
        %v347 = vmul.f32 %v342, %v345
        %v349 = vcombine.high %v347, %v347
        %v351 = vsel %vm286, %v347, 0.0
        %v352 = vrot.slane %v351, 4
        %v353 = vadd.f32 %v351, %v352
        %v354 = vrot.slane %v353, 2
        %v355 = vadd.f32 %v353, %v354
        %v356 = vrot.slane %v355, 1
        %v357 = vadd.f32 %v355, %v356
        %v358 = vsel %vm286, %v349, 0.0
        %v359 = vrot.slane %v358, 4
        %v360 = vadd.f32 %v358, %v359
        %v361 = vrot.slane %v360, 2
        %v362 = vadd.f32 %v360, %v361
        %v363 = vrot.slane %v362, 1
        %v364 = vadd.f32 %v362, %v363
        %v367 = vcombine.low %v357, %v364
        %v369 = vadd.f32 %v332, %v367
        %v370 = vmul.f32 %v317, 4.0
        %v371 = vmul.f32 %v324, 4.0
        %v372 = vrcp.pop %v370
        %v373 = vrcp.pop %v371
        %v376 = vcombine.low %v372, %v373
        %v378 = vmul.f32 %v369, %v376
        %v380 = vlaneseq
        %v381 = vshrl.u32 %v380, 7
        %v382 = vsub.s32 0, %v381
        %v383 = vrot.slane %v378, %v382
        %v384 = vlaneseq
        %v385 = vshrl.u32 %v384, 7
        %v386 = vsub.s32 4, %v385
        %v387 = vrot.slane %v378, %v386
        %vm390 = vcmask 1040384
        %v391 = vsel %vm390, %v383, 0.0
        %v392 = vsel %vm390, %v387, 0.0
        %v393 = vadd.f32 %v391, %v392
        %394 = vadd.xlane.f32.xlu0 %v393
        %v395 = vpop.xlane.xlu0 %394
        %v396 = vrot.slane %v395, 4
        %v397 = vadd.f32 %v395, %v396
        %v398 = vrot.slane %v397, 2
        %v399 = vadd.f32 %v397, %v398
        %v400 = vrot.slane %v399, 1
        %v401 = vadd.f32 %v399, %v400
        %s402 = vtos %v401
        %v403 = vlaneseq
        %v404 = vand.u32 %v403, 127
        %vm405 = vcmp.eq.s32.totalorder %v404, 0
        %vm406 = vmand %vm254, %vm405
        %v407 = vstv %s402
        %v408 = vsel %vm406, %v407, 0.0
        %409 = vst [vmem:[%s187] sm:$0xff] %v408
        %s410 = sand.u32 %s94, 1
        %s411 = scalar_lea.sflag [#allocation3], %s410
        %s412 = sand.u32 %s94, 1
        %s413 = smul.addr %s412, 8
        %s414 = scalar_lea.vmem [#allocation2], %s413
        // Predicated region
        $region29: #{tpu_custom_call.1} parent=27 // pred_check
          %p415 = pneg %p104
        $region30: #{tpu_custom_call.1} parent=27 // pred_check_branch
          %417 = sbr.rel (%p415) target = $region32
        $region31: #{tpu_custom_call.1} parent=27 // pred_region
          %s419 = ssub.s32 128, 128
          %420 = vsyncadd %s411, %s419
          %s421 = sadd.s32 %s21, %s20
          %s422 = smul.addr %s421, 128
          %s423 = scalar_lea.hbm %s2, %s422
          %s425 = sshll.u32 %s414, 4
          %s426 = int_to_ptr.vmem [resolvable:$true] %s425
          %428 = dma.vmem_to_hbm [thread:$0]  %s426, 128, %s423, %s411
        $region32: #{tpu_custom_call.1} parent=27 // pred_fallthru
          _
      $region28: #{tpu_custom_call.1} parent=5 // pred_fallthru
        _
      %p429 = scmp.le.s32.totalorder 2, %s11
      // Predicated region
      $region33: #{tpu_custom_call.1} parent=5 // pred_check
        %p430 = pneg %p429
      $region34: #{tpu_custom_call.1} parent=5 // pred_check_branch
        %432 = sbr.rel (%p430) target = $region36
      $region35: #{tpu_custom_call.1} parent=5 // pred_region
        %s433 = ssub.s32 %s11, 2
        // Predicated region
        $region37: #{tpu_custom_call.1} parent=35 // pred_check
          %p434 = pneg %p110
        $region38: #{tpu_custom_call.1} parent=35 // pred_check_branch
          %436 = sbr.rel (%p434) target = $region40
        $region39: #{tpu_custom_call.1} parent=35 // pred_region
          %s437 = sand.u32 %s95, 1
          %s438 = scalar_lea.sflag [#allocation3], %s437
          %s439 = sand.u32 %s95, 1
          %s440 = smul.addr %s439, 8
          %s441 = scalar_lea.vmem [#allocation2], %s440
          %442 = dma.done %s438, 128
        $region40: #{tpu_custom_call.1} parent=35 // pred_fallthru
          _
      $region36: #{tpu_custom_call.1} parent=5 // pred_fallthru
        _
    $region6: #{tpu_custom_call.1} parent=1 // loop_footer
      %s15 = sadd.s32 1, %s11
    $region7: #{tpu_custom_call.1} parent=1 // loop_footer_branch
      %10 = sbr.rel target = $region3
    $region8: #{tpu_custom_call.1} parent=1 // loop_exit
      _
    %443 = vsyncpa [#allocation3], 1
    %s444 = scalar_lea.sflag [#allocation3], 1
    %445 = vsyncpa %s444, 1

</llo_original>
